<compile_context>
chip_gen: v7x
topology: tpu7x:2x2x1
jax: 0.10.0
libtpu: 0.0.40
codegen_flags: <defaults>
</compile_context>

<pallas_src>
import functools
import math

import jax
import jax.numpy as jnp
from jax.experimental import pallas as pl
from jax.experimental.pallas import tpu as pltpu

LANE = 128                       # vreg lane width (last dim of lane-dense slab)
SUBLANE = 8                      # f32 / int32 native sublane tiling
ALIGN = SUBLANE * LANE           # bulk alignment granularity (1024 elements)
TM_MAX = 8192                    # block rows: 3 streams x 12 B x 2 bufs ~= 24 MiB
VMEM_LIMIT_BYTES = 40 * 1024 * 1024


def _bsgen_kernel(rng_ref, binary_ref, cycle_ref, out_ref, *, rng_len):
    """One (TM, 128) tile: out = (binary > rng[cycle % rng_len]).astype(out).

    The rng table lives in SMEM.  The gather is a bit-indexed binary select
    tree: level l merges value pairs on bit l of the index; after
    log2(rng_len) levels the survivor equals rng[idx].  Cost: (rng_len - 1)
    selects + log2(rng_len)+1 bit ops per element, all on the VPU, no
    cross-lane traffic.
    """
    idx = cycle_ref[...] & (rng_len - 1)   # int32; == torch `%` for pow2 len

    vals = [rng_ref[i] for i in range(rng_len)]  # SMEM scalars
    bit = 1
    while len(vals) > 1:
        take_hi = (idx & bit) != 0
        vals = [jnp.where(take_hi, vals[2 * j + 1], vals[2 * j])
                for j in range(len(vals) // 2)]
        bit <<= 1
    thr = vals[0]

    out_ref[...] = (binary_ref[...] > thr).astype(out_ref.dtype)


def bsgen_forward(binary, cycle, rng, out_dtype=jnp.float32):
    """JAX/Pallas equivalent of BSGen.forward(cycle).

    binary : float array, any shape (NCHW here)
    cycle  : integer array broadcastable to binary.shape (or a scalar)
    rng    : 1D float array, length must be a power of two
    """
    rng_len = int(rng.shape[0])
    width = int(round(math.log2(rng_len)))
    assert (1 << width) == rng_len, "rng length must be a power of two"

    binary = jnp.asarray(binary)
    cycle = jnp.asarray(cycle)
    orig_shape = binary.shape
    n = math.prod(orig_shape)

    # Compare in the operands' natural promoted precision (no forced f32 pass).
    cmp_dtype = jnp.promote_types(binary.dtype, rng.dtype)
    binary_c = binary.astype(cmp_dtype)        # no-op when already cmp_dtype
    rng_c = rng.astype(cmp_dtype)              # tiny table

    # Scalar-cycle fast path: one threshold, one fused elementwise compare.
    # (A Pallas kernel would only add an extra launch here.)
    if math.prod(cycle.shape) == 1:
        idx = (cycle.astype(jnp.int32).reshape(())) & (rng_len - 1)
        thr = rng_c[idx]
        return (binary_c > thr).astype(out_dtype)

    # Full-rank index stream: ship raw int32, fold `% rng_len` in the kernel.
    cycle_full = jnp.broadcast_to(cycle, orig_shape).astype(jnp.int32)

    flat_b = binary_c.reshape(-1)
    flat_c = cycle_full.reshape(-1)

    n_bulk = (n // ALIGN) * ALIGN
    outs = []

    if n_bulk > 0:
        bulk_b = flat_b if n_bulk == n else flat_b[:n_bulk]
        bulk_c = flat_c if n_bulk == n else flat_c[:n_bulk]

        M = n_bulk // LANE
        b2 = bulk_b.reshape(M, LANE)
        c2 = bulk_c.reshape(M, LANE)

        # Block rows: as large as possible to amortize the ~0.35 us/step
        # overhead; TM is either the full extent M or a multiple of SUBLANE.
        TM = min(TM_MAX, M)
        grid = (pl.cdiv(M, TM),)

        out2 = pl.pallas_call(
            functools.partial(_bsgen_kernel, rng_len=rng_len),
            out_shape=jax.ShapeDtypeStruct((M, LANE), out_dtype),
            grid_spec=pltpu.PrefetchScalarGridSpec(
                num_scalar_prefetch=0,
                grid=grid,
                in_specs=[
                    # rng lookup table: whole array, scalar memory.
                    pl.BlockSpec(memory_space=pltpu.MemorySpace.SMEM),
                    pl.BlockSpec((TM, LANE), lambda i: (i, 0)),
                    pl.BlockSpec((TM, LANE), lambda i: (i, 0)),
                ],
                out_specs=pl.BlockSpec((TM, LANE), lambda i: (i, 0)),
            ),
            compiler_params=pltpu.CompilerParams(
                dimension_semantics=("parallel",),
                vmem_limit_bytes=VMEM_LIMIT_BYTES),
        )(rng_c, b2, c2)
        outs.append(out2.reshape(-1))

    if n_bulk < n:
        # Ragged tail (< 1024 elements): plain fused jnp, no pad / slice-out
        # passes over the big streams.
        tail_b = flat_b[n_bulk:]
        tail_i = flat_c[n_bulk:] & (rng_len - 1)
        outs.append((tail_b > rng_c[tail_i]).astype(out_dtype))

    out_flat = outs[0] if len(outs) == 1 else jnp.concatenate(outs)
    return out_flat.reshape(orig_shape)


if __name__ == "__main__":
    key = jax.random.PRNGKey(0)
    k_bin, k_cyc, k_rng, k_bin2, k_cyc2 = jax.random.split(key, 5)

    # Module parameters (deterministic, synthetic):
    #   rng: length-16 permutation of [0, 15] (power-of-two length, width=4)
    #   binary: NCHW "binary-coded" values in [0, 16)
    rng_len = 16
    rng = jax.random.permutation(
        k_rng, jnp.arange(rng_len, dtype=jnp.float32))

    # --- primary test: aligned shape, per-element cycle tensor -------------
    B, C, H, W = 2, 4, 16, 16
    binary = jax.random.uniform(
        k_bin, (B, C, H, W), dtype=jnp.float32, minval=0.0,
        maxval=float(rng_len))
    cycle = jax.random.randint(k_cyc, (B, C, H, W), 0, 4 * rng_len,
                               dtype=jnp.int32)

    fwd = jax.jit(bsgen_forward)
    out = jax.block_until_ready(fwd(binary, cycle, rng))

    ref = (binary > rng[(cycle.astype(jnp.int32) % rng_len)]).astype(jnp.float32)
    assert out.shape == (B, C, H, W)
    assert out.dtype == jnp.float32
    assert bool(jnp.all(out == ref)), "mismatch vs reference (aligned case)"

    # --- secondary test: misaligned shape (bulk kernel + jnp tail) ---------
    shape2 = (3, 5, 7, 11)   # 1155 elements -> 1024 bulk + 131 tail
    binary2 = jax.random.uniform(k_bin2, shape2, dtype=jnp.float32,
                                 minval=0.0, maxval=float(rng_len))
    cycle2 = jax.random.randint(k_cyc2, shape2, 0, 4 * rng_len,
                                dtype=jnp.int32)
    out2 = jax.block_until_ready(fwd(binary2, cycle2, rng))
    ref2 = (binary2 > rng[(cycle2.astype(jnp.int32) % rng_len)]).astype(jnp.float32)
    assert bool(jnp.all(out2 == ref2)), "mismatch vs reference (misaligned case)"

    # --- scalar-cycle fast path ---------------------------------------------
    out3 = jax.block_until_ready(fwd(binary, jnp.int32(7), rng))
    ref3 = (binary > rng[7 % rng_len]).astype(jnp.float32)
    assert bool(jnp.all(out3 == ref3)), "mismatch vs reference (scalar cycle)"

    print("KERNEL_OK")
</pallas_src>

<mosaic_0001>
module attributes {stable_mosaic.version = 11 : i64} {
  func.func @_bsgen_kernel(%arg0: i32, %arg1: memref<16xf32, #tpu.memory_space<smem>>, %arg2: memref<16x128xf32, #tpu.memory_space<vmem>>, %arg3: memref<16x128xi32, #tpu.memory_space<vmem>>, %arg4: memref<16x128xf32, #tpu.memory_space<vmem>>) attributes {dimension_semantics = [#tpu.dimension_semantics<parallel>], iteration_bounds = array<i64: 1>, scalar_prefetch = 0 : i64, scratch_operands = 0 : i64, tpu.core_type = #tpu.core_type<tc>, window_params = [{transform_indices = @transform_0, window_bounds = array<i64: 16>}, {transform_indices = @transform_1, window_bounds = array<i64: 16, 128>}, {transform_indices = @transform_2, window_bounds = array<i64: 16, 128>}, {transform_indices = @transform_3, window_bounds = array<i64: 16, 128>}]} {
    %c0 = arith.constant 0 : index
    %c0_0 = arith.constant 0 : index
    %0 = vector.load %arg3[%c0, %c0_0] : memref<16x128xi32, #tpu.memory_space<vmem>>, vector<16x128xi32>
    %c15_i32 = arith.constant 15 : i32
    %1 = vector.broadcast %c15_i32 : i32 to vector<16x128xi32>
    %2 = arith.andi %0, %1 : vector<16x128xi32>
    %c0_1 = arith.constant 0 : index
    %3 = memref.load %arg1[%c0_1] : memref<16xf32, #tpu.memory_space<smem>>
    %c1 = arith.constant 1 : index
    %4 = memref.load %arg1[%c1] : memref<16xf32, #tpu.memory_space<smem>>
    %c2 = arith.constant 2 : index
    %5 = memref.load %arg1[%c2] : memref<16xf32, #tpu.memory_space<smem>>
    %c3 = arith.constant 3 : index
    %6 = memref.load %arg1[%c3] : memref<16xf32, #tpu.memory_space<smem>>
    %c4 = arith.constant 4 : index
    %7 = memref.load %arg1[%c4] : memref<16xf32, #tpu.memory_space<smem>>
    %c5 = arith.constant 5 : index
    %8 = memref.load %arg1[%c5] : memref<16xf32, #tpu.memory_space<smem>>
    %c6 = arith.constant 6 : index
    %9 = memref.load %arg1[%c6] : memref<16xf32, #tpu.memory_space<smem>>
    %c7 = arith.constant 7 : index
    %10 = memref.load %arg1[%c7] : memref<16xf32, #tpu.memory_space<smem>>
    %c8 = arith.constant 8 : index
    %11 = memref.load %arg1[%c8] : memref<16xf32, #tpu.memory_space<smem>>
    %c9 = arith.constant 9 : index
    %12 = memref.load %arg1[%c9] : memref<16xf32, #tpu.memory_space<smem>>
    %c10 = arith.constant 10 : index
    %13 = memref.load %arg1[%c10] : memref<16xf32, #tpu.memory_space<smem>>
    %c11 = arith.constant 11 : index
    %14 = memref.load %arg1[%c11] : memref<16xf32, #tpu.memory_space<smem>>
    %c12 = arith.constant 12 : index
    %15 = memref.load %arg1[%c12] : memref<16xf32, #tpu.memory_space<smem>>
    %c13 = arith.constant 13 : index
    %16 = memref.load %arg1[%c13] : memref<16xf32, #tpu.memory_space<smem>>
    %c14 = arith.constant 14 : index
    %17 = memref.load %arg1[%c14] : memref<16xf32, #tpu.memory_space<smem>>
    %c15 = arith.constant 15 : index
    %18 = memref.load %arg1[%c15] : memref<16xf32, #tpu.memory_space<smem>>
    %c1_i32 = arith.constant 1 : i32
    %19 = vector.broadcast %c1_i32 : i32 to vector<16x128xi32>
    %20 = arith.andi %2, %19 : vector<16x128xi32>
    %c0_i32 = arith.constant 0 : i32
    %21 = vector.broadcast %c0_i32 : i32 to vector<16x128xi32>
    %22 = arith.cmpi ne, %20, %21 : vector<16x128xi32>
    %23 = vector.broadcast %4 : f32 to vector<16x128xf32>
    %24 = vector.broadcast %3 : f32 to vector<16x128xf32>
    %25 = arith.select %22, %23, %24 : vector<16x128xi1>, vector<16x128xf32>
    %26 = vector.broadcast %6 : f32 to vector<16x128xf32>
    %27 = vector.broadcast %5 : f32 to vector<16x128xf32>
    %28 = arith.select %22, %26, %27 : vector<16x128xi1>, vector<16x128xf32>
    %29 = vector.broadcast %8 : f32 to vector<16x128xf32>
    %30 = vector.broadcast %7 : f32 to vector<16x128xf32>
    %31 = arith.select %22, %29, %30 : vector<16x128xi1>, vector<16x128xf32>
    %32 = vector.broadcast %10 : f32 to vector<16x128xf32>
    %33 = vector.broadcast %9 : f32 to vector<16x128xf32>
    %34 = arith.select %22, %32, %33 : vector<16x128xi1>, vector<16x128xf32>
    %35 = vector.broadcast %12 : f32 to vector<16x128xf32>
    %36 = vector.broadcast %11 : f32 to vector<16x128xf32>
    %37 = arith.select %22, %35, %36 : vector<16x128xi1>, vector<16x128xf32>
    %38 = vector.broadcast %14 : f32 to vector<16x128xf32>
    %39 = vector.broadcast %13 : f32 to vector<16x128xf32>
    %40 = arith.select %22, %38, %39 : vector<16x128xi1>, vector<16x128xf32>
    %41 = vector.broadcast %16 : f32 to vector<16x128xf32>
    %42 = vector.broadcast %15 : f32 to vector<16x128xf32>
    %43 = arith.select %22, %41, %42 : vector<16x128xi1>, vector<16x128xf32>
    %44 = vector.broadcast %18 : f32 to vector<16x128xf32>
    %45 = vector.broadcast %17 : f32 to vector<16x128xf32>
    %46 = arith.select %22, %44, %45 : vector<16x128xi1>, vector<16x128xf32>
    %c2_i32 = arith.constant 2 : i32
    %47 = vector.broadcast %c2_i32 : i32 to vector<16x128xi32>
    %48 = arith.andi %2, %47 : vector<16x128xi32>
    %c0_i32_2 = arith.constant 0 : i32
    %49 = vector.broadcast %c0_i32_2 : i32 to vector<16x128xi32>
    %50 = arith.cmpi ne, %48, %49 : vector<16x128xi32>
    %51 = arith.select %50, %28, %25 : vector<16x128xi1>, vector<16x128xf32>
    %52 = arith.select %50, %34, %31 : vector<16x128xi1>, vector<16x128xf32>
    %53 = arith.select %50, %40, %37 : vector<16x128xi1>, vector<16x128xf32>
    %54 = arith.select %50, %46, %43 : vector<16x128xi1>, vector<16x128xf32>
    %c4_i32 = arith.constant 4 : i32
    %55 = vector.broadcast %c4_i32 : i32 to vector<16x128xi32>
    %56 = arith.andi %2, %55 : vector<16x128xi32>
    %c0_i32_3 = arith.constant 0 : i32
    %57 = vector.broadcast %c0_i32_3 : i32 to vector<16x128xi32>
    %58 = arith.cmpi ne, %56, %57 : vector<16x128xi32>
    %59 = arith.select %58, %52, %51 : vector<16x128xi1>, vector<16x128xf32>
    %60 = arith.select %58, %54, %53 : vector<16x128xi1>, vector<16x128xf32>
    %c8_i32 = arith.constant 8 : i32
    %61 = vector.broadcast %c8_i32 : i32 to vector<16x128xi32>
    %62 = arith.andi %2, %61 : vector<16x128xi32>
    %c0_i32_4 = arith.constant 0 : i32
    %63 = vector.broadcast %c0_i32_4 : i32 to vector<16x128xi32>
    %64 = arith.cmpi ne, %62, %63 : vector<16x128xi32>
    %65 = arith.select %64, %60, %59 : vector<16x128xi1>, vector<16x128xf32>
    %c0_5 = arith.constant 0 : index
    %c0_6 = arith.constant 0 : index
    %66 = vector.load %arg2[%c0_5, %c0_6] : memref<16x128xf32, #tpu.memory_space<vmem>>, vector<16x128xf32>
    %67 = arith.cmpf ogt, %66, %65 : vector<16x128xf32>
    %68 = arith.extui %67 : vector<16x128xi1> to vector<16x128xi32>
    %69 = arith.sitofp %68 : vector<16x128xi32> to vector<16x128xf32>
    %c0_7 = arith.constant 0 : index
    %c0_8 = arith.constant 0 : index
    %70 = vector.load %arg4[%c0_7, %c0_8] : memref<16x128xf32, #tpu.memory_space<vmem>>, vector<16x128xf32>
    tpu.vector_store %arg4[%c0_7, %c0_8], %69 {strides = array<i32>} : memref<16x128xf32, #tpu.memory_space<vmem>>, vector<16x128xf32>,
    return
  }
  func.func @transform_0(%arg0: i32) -> i32 {
    %c0_i32 = arith.constant 0 : i32
    %c0_i32_0 = arith.constant 0 : i32
    return %c0_i32 : i32
  }
  func.func @transform_1(%arg0: i32) -> (i32, i32) {
    %c0_i32 = arith.constant 0 : i32
    %c0_i32_0 = arith.constant 0 : i32
    return %arg0, %c0_i32 : i32, i32
  }
  func.func @transform_2(%arg0: i32) -> (i32, i32) {
    %c0_i32 = arith.constant 0 : i32
    %c0_i32_0 = arith.constant 0 : i32
    return %arg0, %c0_i32 : i32, i32
  }
  func.func @transform_3(%arg0: i32) -> (i32, i32) {
    %c0_i32 = arith.constant 0 : i32
    %c0_i32_0 = arith.constant 0 : i32
    return %arg0, %c0_i32 : i32, i32
  }
}

</mosaic_0001>

<llo_original>
// kernel: bsgen_forward.1
$region0: #{bsgen_forward.1}
  #allocation0 [shape = 'u32[]', space=smem, size = 0x4, offset = 0x4, fixed_abs, tag = 'smem constant byte address 0x4 - core index']
  #allocation1 [shape = 'u32[144,128]{1,0:T(1,128)}', space=vmem, size = 0x12000, scoped, tag = 'internal scratch']
  %s0 = inlined_call_operand.vmem [shape: f32[16], index: 0, kind: input, shape index: {}]
  %s1 = inlined_call_operand.vmem [shape: f32[16,128], index: 1, kind: input, shape index: {}]
  %s2 = inlined_call_operand.vmem [shape: s32[16,128], index: 2, kind: input, shape index: {}]
  %s3 = inlined_call_operand.vmem [shape: f32[16,128], index: 3, kind: output, shape index: {}]
  %s4 = sld [smem:[#allocation0]]
  $region26: #{bsgen_forward.1} parent=0
    _
  %s6 = ssub.s32 1, %s4
  %s7 = scalar_select 0, %s6, %s4
  $region1: #{bsgen_forward.1} parent=0
    #allocation2 [shape = 'u8[512]{0}', space=smem, size = 0x200, scoped, tag = 'input window, operand 0, single buffered']
    #allocation3 [shape = 's32[1]{0}', space=sflag, size = 0x4, scoped, tag = 'scoped memory for bsgen_forward.1']
    %8 = vsyncpa [#allocation3], 0
    // Predicated region
    $region2: #{bsgen_forward.1} parent=1 // pred_check
      _
    $region3: #{bsgen_forward.1} parent=1 // pred_check_branch
      %10 = sbr.rel (0) target = $region5
    $region4: #{bsgen_forward.1} parent=1 // pred_region
      %s12 = ssub.s32 16, 16
      %13 = vsyncadd [#allocation3], %s12
      %s15 = sshll.u32 %s0, 4
      %s16 = int_to_ptr.vmem [resolvable:$true] %s15
      %18 = dma.vmem_to_smem %s16, 16, [#allocation2], [#allocation3]
    $region5: #{bsgen_forward.1} parent=1 // pred_fallthru
      _
    // Predicated region
    $region6: #{bsgen_forward.1} parent=1 // pred_check
      _
    $region7: #{bsgen_forward.1} parent=1 // pred_check_branch
      %20 = sbr.rel (0) target = $region9
    $region8: #{bsgen_forward.1} parent=1 // pred_region
      _
    $region9: #{bsgen_forward.1} parent=1 // pred_fallthru
      _
    // Predicated region
    $region10: #{bsgen_forward.1} parent=1 // pred_check
      _
    $region11: #{bsgen_forward.1} parent=1 // pred_check_branch
      %22 = sbr.rel (0) target = $region13
    $region12: #{bsgen_forward.1} parent=1 // pred_region
      _
    $region13: #{bsgen_forward.1} parent=1 // pred_fallthru
      _
    // Predicated region
    $region14: #{bsgen_forward.1} parent=1 // pred_check
      _
    $region15: #{bsgen_forward.1} parent=1 // pred_check_branch
      %24 = sbr.rel (0) target = $region17
    $region16: #{bsgen_forward.1} parent=1 // pred_region
      %25 = dma.done [#allocation3], 16
    $region17: #{bsgen_forward.1} parent=1 // pred_fallthru
      _
    %26 = sfence
    %v27 = vld [vmem:[%s2] sm:$0xff]
    %v28 = vld [vmem:[%s2 + $0x8] sm:$0xff]
    %v29 = vand.u32 %v27, 15
    %v30 = vand.u32 %v28, 15
    %s31 = sld [smem:[#allocation2]]
    %s32 = sld [smem:[#allocation2 + $0x1]]
    %s33 = sld [smem:[#allocation2 + $0x2]]
    %s34 = sld [smem:[#allocation2 + $0x3]]
    %s35 = sld [smem:[#allocation2 + $0x4]]
    %s36 = sld [smem:[#allocation2 + $0x5]]
    %s37 = sld [smem:[#allocation2 + $0x6]]
    %s38 = sld [smem:[#allocation2 + $0x7]]
    %s39 = sld [smem:[#allocation2 + $0x8]]
    %s40 = sld [smem:[#allocation2 + $0x9]]
    %s41 = sld [smem:[#allocation2 + $0xa]]
    %s42 = sld [smem:[#allocation2 + $0xb]]
    %s43 = sld [smem:[#allocation2 + $0xc]]
    %s44 = sld [smem:[#allocation2 + $0xd]]
    %s45 = sld [smem:[#allocation2 + $0xe]]
    %s46 = sld [smem:[#allocation2 + $0xf]]
    %v47 = vand.u32 %v29, 1
    %v48 = vand.u32 %v30, 1
    %vm49 = vcmp.ne.s32.totalorder %v47, 0
    %vm50 = vcmp.ne.s32.totalorder %v48, 0
    %v51 = vstv %s32
    %v52 = vstv %s31
    %v53 = vsel %vm49, %v51, %v52
    %v54 = vsel %vm50, %v51, %v52
    %v55 = vstv %s34
    %v56 = vstv %s33
    %v57 = vsel %vm49, %v55, %v56
    %v58 = vsel %vm50, %v55, %v56
    %v59 = vstv %s36
    %v60 = vstv %s35
    %v61 = vsel %vm49, %v59, %v60
    %v62 = vsel %vm50, %v59, %v60
    %v63 = vstv %s38
    %v64 = vstv %s37
    %v65 = vsel %vm49, %v63, %v64
    %v66 = vsel %vm50, %v63, %v64
    %v67 = vstv %s40
    %v68 = vstv %s39
    %v69 = vsel %vm49, %v67, %v68
    %v70 = vsel %vm50, %v67, %v68
    %v71 = vstv %s42
    %v72 = vstv %s41
    %v73 = vsel %vm49, %v71, %v72
    %v74 = vsel %vm50, %v71, %v72
    %v75 = vstv %s44
    %v76 = vstv %s43
    %v77 = vsel %vm49, %v75, %v76
    %v78 = vsel %vm50, %v75, %v76
    %v79 = vstv %s46
    %v80 = vstv %s45
    %v81 = vsel %vm49, %v79, %v80
    %v82 = vsel %vm50, %v79, %v80
    %v83 = vand.u32 %v29, 2
    %v84 = vand.u32 %v30, 2
    %vm85 = vcmp.ne.s32.totalorder %v83, 0
    %vm86 = vcmp.ne.s32.totalorder %v84, 0
    %v87 = vsel %vm85, %v57, %v53
    %v88 = vsel %vm86, %v58, %v54
    %v89 = vsel %vm85, %v65, %v61
    %v90 = vsel %vm86, %v66, %v62
    %v91 = vsel %vm85, %v73, %v69
    %v92 = vsel %vm86, %v74, %v70
    %v93 = vsel %vm85, %v81, %v77
    %v94 = vsel %vm86, %v82, %v78
    %v95 = vand.u32 %v29, 4
    %v96 = vand.u32 %v30, 4
    %vm97 = vcmp.ne.s32.totalorder %v95, 0
    %vm98 = vcmp.ne.s32.totalorder %v96, 0
    %v99 = vsel %vm97, %v89, %v87
    %v100 = vsel %vm98, %v90, %v88
    %v101 = vsel %vm97, %v93, %v91
    %v102 = vsel %vm98, %v94, %v92
    %v103 = vand.u32 %v29, 8
    %v104 = vand.u32 %v30, 8
    %vm105 = vcmp.ne.s32.totalorder %v103, 0
    %vm106 = vcmp.ne.s32.totalorder %v104, 0
    %v107 = vsel %vm105, %v101, %v99
    %v108 = vsel %vm106, %v102, %v100
    %v109 = vld [vmem:[%s1] sm:$0xff]
    %v110 = vld [vmem:[%s1 + $0x8] sm:$0xff]
    %vm111 = vcmp.gt.f32.partialorder %v109, %v107
    %vm112 = vcmp.gt.f32.partialorder %v110, %v108
    %v113 = vsel %vm111, 1, 0
    %v114 = vsel %vm112, 1, 0
    %v115 = vcvt.s32.f32 %v113
    %v116 = vcvt.s32.f32 %v114
    %117 = vst [vmem:[%s3] sm:$0xff] %v115
    %118 = vst [vmem:[%s3 + $0x8] sm:$0xff] %v116
    // Predicated region
    $region18: #{bsgen_forward.1} parent=1 // pred_check
      _
    $region19: #{bsgen_forward.1} parent=1 // pred_check_branch
      %120 = sbr.rel (0) target = $region21
    $region20: #{bsgen_forward.1} parent=1 // pred_region
      _
    $region21: #{bsgen_forward.1} parent=1 // pred_fallthru
      _
    // Predicated region
    $region22: #{bsgen_forward.1} parent=1 // pred_check
      _
    $region23: #{bsgen_forward.1} parent=1 // pred_check_branch
      %122 = sbr.rel (0) target = $region25
    $region24: #{bsgen_forward.1} parent=1 // pred_region
      _
    $region25: #{bsgen_forward.1} parent=1 // pred_fallthru
      _
    %123 = vsyncpa [#allocation3], 1

</llo_original>
